<compile_context>
chip_gen: v6e
topology: v6e:2x2x1
jax: 0.10.0
libtpu: 0.0.40
codegen_flags: <defaults>
</compile_context>

<pallas_src>
import jax
import jax.numpy as jnp
from jax.experimental import pallas as pl
from jax.experimental.pallas import tpu as pltpu

LANE = 128  # TPU lane width; pad the label dim so every store is lane-dense.


def fuse_table_kernel(emb_ref, w_ref, b_ref, t_ref):
    """One-time parameter fusion: T = emb @ W_pad + b_pad.

    emb_ref : (V, E)     f32 VMEM
    w_ref   : (E, Lpad)  f32 VMEM   (Linear weight, transposed + zero-padded)
    b_ref   : (1, Lpad)  f32 VMEM   (bias, zero-padded)
    t_ref   : (V, Lpad)  f32 VMEM
    """
    t_ref[...] = (
        jnp.dot(emb_ref[...], w_ref[...], preferred_element_type=jnp.float32)
        + b_ref[...]
    )


def gather_row_kernel(ids_smem_ref, t_row_ref, out_ref):
    """Copy one fused-table row (bias already folded in) to the output row.

    The gather itself happens in the BlockSpec index_map (ids[i] -> table row),
    so the body is a pure lane-dense (1, 128) copy. ids are only consumed by
    the index_maps (SMEM scalar prefetch), never loaded as vectors.
    """
    del ids_smem_ref
    out_ref[...] = t_row_ref[...]


def cnn_forward(token_ids, emb_table, lin_weight, lin_bias):
    """token_ids: (B, S) int -> (B, S, L) float32 == Linear(Embedding(ids))."""
    B, S = token_ids.shape
    V, E = emb_table.shape
    L, E2 = lin_weight.shape
    assert E == E2
    Lpad = max(LANE, ((L + LANE - 1) // LANE) * LANE)
    N = B * S

    # --- layout plumbing (parameter-only) ----------------------------------
    w_pad = jnp.zeros((E, Lpad), jnp.float32).at[:, :L].set(
        lin_weight.T.astype(jnp.float32))
    b_pad = jnp.zeros((1, Lpad), jnp.float32).at[:, :L].set(
        lin_bias.astype(jnp.float32))

    # --- kernel 1: fused (V, Lpad) table = emb @ W.T + b --------------------
    # TODO(synk): for production-scale vocab, tile this build over V with a
    # grid; at these sizes the whole table fits trivially in VMEM.
    t_pad = pl.pallas_call(
        fuse_table_kernel,
        out_shape=jax.ShapeDtypeStruct((V, Lpad), jnp.float32),
        in_specs=[
            pl.BlockSpec(memory_space=pltpu.MemorySpace.VMEM),
            pl.BlockSpec(memory_space=pltpu.MemorySpace.VMEM),
            pl.BlockSpec(memory_space=pltpu.MemorySpace.VMEM),
        ],
        out_specs=pl.BlockSpec(memory_space=pltpu.MemorySpace.VMEM),
    )(emb_table.astype(jnp.float32), w_pad, b_pad)

    # --- kernel 2: per-token row gather of the fused table ------------------
    # Clamp ids so an out-of-range token cannot trigger an OOB DMA
    # (PyTorch nn.Embedding would raise instead).
    ids = jnp.clip(token_ids.reshape(N).astype(jnp.int32), 0, V - 1)

    grid_spec = pltpu.PrefetchScalarGridSpec(
        num_scalar_prefetch=1,          # ids -> SMEM, visible to index_maps
        grid=(N,),
        in_specs=[
            # Data-dependent gather: block size 1 along rows => block index
            # equals the token id; Pallas DMAs exactly that (1, Lpad) row.
            pl.BlockSpec((1, Lpad), lambda i, ids_ref: (ids_ref[i], 0)),
        ],
        out_specs=pl.BlockSpec((1, Lpad), lambda i, ids_ref: (i, 0)),
    )

    out_pad = pl.pallas_call(
        gather_row_kernel,
        out_shape=jax.ShapeDtypeStruct((N, Lpad), jnp.float32),
        grid_spec=grid_spec,
        compiler_params=pltpu.CompilerParams(
            dimension_semantics=("parallel",),
        ),
    )(ids, t_pad)

    return out_pad[:, :L].reshape(B, S, L)


if __name__ == "__main__":
    # Small shapes consistent with the module:
    #   vocab_len=50, embedding_dim=32, len(num_labels)=4, batch=2, seq=8
    V, E, L = 50, 32, 4
    B, S = 2, 8

    key = jax.random.PRNGKey(0)
    k_ids, k_emb, k_w, k_b = jax.random.split(key, 4)

    # Deterministic parameter init (mirrors PyTorch defaults):
    #   nn.Embedding: N(0, 1);  nn.Linear: U(-1/sqrt(E), 1/sqrt(E))
    emb_table = jax.random.normal(k_emb, (V, E), dtype=jnp.float32)
    bound = 1.0 / jnp.sqrt(jnp.float32(E))
    lin_weight = jax.random.uniform(k_w, (L, E), minval=-bound, maxval=bound,
                                    dtype=jnp.float32)
    lin_bias = jax.random.uniform(k_b, (L,), minval=-bound, maxval=bound,
                                  dtype=jnp.float32)

    token_ids = jax.random.randint(k_ids, (B, S), 0, V, dtype=jnp.int32)

    out = cnn_forward(token_ids, emb_table, lin_weight, lin_bias)
    out = jax.block_until_ready(out)

    # Reference check in plain JAX (Embedding -> Linear).
    ref = emb_table[token_ids] @ lin_weight.T + lin_bias
    assert out.shape == (B, S, L)
    assert jnp.allclose(out, ref, atol=1e-5, rtol=1e-5)

    print("KERNEL_OK")
</pallas_src>

<mosaic_0001>
module attributes {stable_mosaic.version = 11 : i64} {
  func.func @fuse_table_kernel(%arg0: memref<50x32xf32, #tpu.memory_space<vmem>>, %arg1: memref<32x128xf32, #tpu.memory_space<vmem>>, %arg2: memref<1x128xf32, #tpu.memory_space<vmem>>, %arg3: memref<50x128xf32, #tpu.memory_space<vmem>>) attributes {dimension_semantics = [], scalar_prefetch = 0 : i64, scratch_operands = 0 : i64, tpu.core_type = #tpu.core_type<tc>} {
    %c0 = arith.constant 0 : index
    %c0_0 = arith.constant 0 : index
    %0 = vector.load %arg0[%c0, %c0_0] : memref<50x32xf32, #tpu.memory_space<vmem>>, vector<50x32xf32>
    %c0_1 = arith.constant 0 : index
    %c0_2 = arith.constant 0 : index
    %1 = vector.load %arg1[%c0_1, %c0_2] : memref<32x128xf32, #tpu.memory_space<vmem>>, vector<32x128xf32>
    %cst = arith.constant dense<0.000000e+00> : vector<50x128xf32>
    %2 = tpu.matmul %0, %1, %cst {dimension_numbers = #tpu.dot_dimension_numbers<[1], [0], [0], [1], [0, 0, 1, 1], [], []>} : vector<50x32xf32>, vector<32x128xf32>, vector<50x128xf32> -> vector<50x128xf32>
    %c0_3 = arith.constant 0 : index
    %c0_4 = arith.constant 0 : index
    %3 = vector.load %arg2[%c0_3, %c0_4] : memref<1x128xf32, #tpu.memory_space<vmem>>, vector<1x128xf32>
    %4 = vector.broadcast %3 : vector<1x128xf32> to vector<50x128xf32>
    %5 = arith.addf %2, %4 : vector<50x128xf32>
    %c0_5 = arith.constant 0 : index
    %c0_6 = arith.constant 0 : index
    %6 = vector.load %arg3[%c0_5, %c0_6] : memref<50x128xf32, #tpu.memory_space<vmem>>, vector<50x128xf32>
    tpu.vector_store %arg3[%c0_5, %c0_6], %5 {strides = array<i32>} : memref<50x128xf32, #tpu.memory_space<vmem>>, vector<50x128xf32>,
    return
  }
}

</mosaic_0001>

<llo_original>
// kernel: tpu_custom_call.1
$region0: #{tpu_custom_call.1}
  #allocation0 [shape = 'u32[]', space=smem, size = 0x4, offset = 0x4, fixed_abs, tag = 'smem constant byte address 0x4 - core index']
  #allocation1 [shape = 'u32[144,128]{1,0:T(1,128)}', space=vmem, size = 0x12000, scoped, tag = 'internal scratch']
  %s0 = inlined_call_operand.vmem [shape: f32[50,32], index: 0, kind: input, shape index: {}]
  %s1 = inlined_call_operand.vmem [shape: f32[32,128], index: 1, kind: input, shape index: {}]
  %s2 = inlined_call_operand.vmem [shape: f32[1,128], index: 2, kind: input, shape index: {}]
  %s3 = inlined_call_operand.hbm [shape: f32[50,128], index: 3, kind: output, shape index: {}]
  %s4 = sld [smem:[#allocation0]]
  $region22: #{tpu_custom_call.1} parent=0
    _
  %s6 = ssub.s32 1, %s4
  %s7 = scalar_select 0, %s6, %s4
  $region1: #{tpu_custom_call.1} parent=0
    #allocation2 [shape = 'u8[28672]{0}', space=vmem, size = 0x7000, scoped, tag = 'output window, operand 0, single buffered']
    #allocation3 [shape = 's32[1]{0}', space=sflag, size = 0x4, scoped, tag = 'scoped memory for tpu_custom_call.1']
    %8 = vsyncpa [#allocation3], 0
    // Predicated region
    $region2: #{tpu_custom_call.1} parent=1 // pred_check
      _
    $region3: #{tpu_custom_call.1} parent=1 // pred_check_branch
      %10 = sbr.rel (0) target = $region5
    $region4: #{tpu_custom_call.1} parent=1 // pred_region
      _
    $region5: #{tpu_custom_call.1} parent=1 // pred_fallthru
      _
    // Predicated region
    $region6: #{tpu_custom_call.1} parent=1 // pred_check
      _
    $region7: #{tpu_custom_call.1} parent=1 // pred_check_branch
      %12 = sbr.rel (0) target = $region9
    $region8: #{tpu_custom_call.1} parent=1 // pred_region
      _
    $region9: #{tpu_custom_call.1} parent=1 // pred_fallthru
      _
    // Predicated region
    $region10: #{tpu_custom_call.1} parent=1 // pred_check
      _
    $region11: #{tpu_custom_call.1} parent=1 // pred_check_branch
      %14 = sbr.rel (0) target = $region13
    $region12: #{tpu_custom_call.1} parent=1 // pred_region
      _
    $region13: #{tpu_custom_call.1} parent=1 // pred_fallthru
      _
    %v15 = vld [vmem:[%s0] sm:$0xff]
    %v16 = vld [vmem:[%s0 + $0x8] sm:$0xff]
    %v17 = vld [vmem:[%s0 + $0x10] sm:$0xff]
    %v18 = vld [vmem:[%s0 + $0x18] sm:$0xff]
    %v19 = vld [vmem:[%s0 + $0x20] sm:$0xff]
    %v20 = vld [vmem:[%s0 + $0x28] sm:$0xff]
    %v21 = vld [vmem:[%s0 + $0x30] sm:$0x3]
    %v22 = vld [vmem:[%s1] sm:$0xff]
    %v23 = vld [vmem:[%s1 + $0x8] sm:$0xff]
    %v24 = vld [vmem:[%s1 + $0x10] sm:$0xff]
    %v25 = vld [vmem:[%s1 + $0x18] sm:$0xff]
    %v26 = vld [vmem:[%s2] sm:$0x1]
    %v28 = vlaneseq
    %v29 = vshrl.u32 %v28, 7
    %v30 = vsub.s32 0, %v29
    %v31 = vrot.slane %v26, %v30
    %vm33 = vcmask 261120
    %v35 = vsel %vm33, %v15, 0
    %v38 = vsel %vm33, %v16, 0
    %v41 = vsel %vm33, %v17, 0
    %v44 = vsel %vm33, %v18, 0
    %v47 = vsel %vm33, %v19, 0
    %v50 = vsel %vm33, %v20, 0
    %v53 = vsel %vm33, %v21, 0
    %55 = vmatprep.subr.mxu0 0.0
    %56 = vmatpush1.msra.mxu0 0.0
    %57 = vmatprep.subr.mxu0 0.0
    %58 = vmatpush1.msra.mxu0 0.0
    %59 = vmatprep.subr.mxu0 0.0
    %60 = vmatpush1.msra.mxu0 0.0
    %61 = vmatprep.subr.mxu0 0.0
    %62 = vmatpush1.msra.mxu0 0.0
    %63 = vmatprep.subr.mxu0 0.0
    %64 = vmatpush1.msra.mxu0 0.0
    %65 = vmatprep.subr.mxu0 0.0
    %66 = vmatpush1.msra.mxu0 0.0
    %67 = vmatprep.subr.mxu0 0.0
    %68 = vmatpush1.msra.mxu0 0.0
    %69 = vmatprep.subr.mxu0 0.0
    %70 = vmatpush1.msra.mxu0 0.0
    %71 = vmatprep.subr.mxu0 0.0
    %72 = vmatpush1.msra.mxu0 0.0
    %73 = vmatprep.subr.mxu0 0.0
    %74 = vmatpush1.msra.mxu0 0.0
    %75 = vmatprep.subr.mxu0 0.0
    %76 = vmatpush1.msra.mxu0 0.0
    %77 = vmatprep.subr.mxu0 0.0
    %78 = vmatpush1.msra.mxu0 0.0
    %79 = vmatprep.subr.mxu0 0.0
    %80 = vmatpush1.msra.mxu0 %v25
    %81 = vmatprep.subr.mxu0 0.0
    %82 = vmatpush1.msra.mxu0 %v24
    %83 = vmatprep.subr.mxu0 0.0
    %84 = vmatpush1.msra.mxu0 %v23
    %85 = vmatprep.subr.mxu0 0.0
    %86 = vmatpush1.msra.mxu0 %v22
    %87 = vmatprep.subr.mxu0 0.0
    %88 = vmatpush2.msra.mxu0 0.0
    %89 = vmatprep.subr.mxu0 0.0
    %90 = vmatpush2.msra.mxu0 0.0
    %91 = vmatprep.subr.mxu0 0.0
    %92 = vmatpush2.msra.mxu0 0.0
    %93 = vmatprep.subr.mxu0 0.0
    %94 = vmatpush2.msra.mxu0 0.0
    %95 = vmatprep.subr.mxu0 0.0
    %96 = vmatpush2.msra.mxu0 0.0
    %97 = vmatprep.subr.mxu0 0.0
    %98 = vmatpush2.msra.mxu0 0.0
    %99 = vmatprep.subr.mxu0 0.0
    %100 = vmatpush2.msra.mxu0 0.0
    %101 = vmatprep.subr.mxu0 0.0
    %102 = vmatpush2.msra.mxu0 0.0
    %103 = vmatprep.subr.mxu0 0.0
    %104 = vmatpush2.msra.mxu0 0.0
    %105 = vmatprep.subr.mxu0 0.0
    %106 = vmatpush2.msra.mxu0 0.0
    %107 = vmatprep.subr.mxu0 0.0
    %108 = vmatpush2.msra.mxu0 0.0
    %109 = vmatprep.subr.mxu0 0.0
    %110 = vmatpush2.msra.mxu0 0.0
    %111 = vmatprep.subr.mxu0 0.0
    %112 = vmatpush2.msra.mxu0 0.0
    %113 = vmatprep.subr.mxu0 0.0
    %114 = vmatpush2.msra.mxu0 0.0
    %115 = vmatprep.subr.mxu0 0.0
    %116 = vmatpush2.msra.mxu0 0.0
    %117 = vmatprep.subr.mxu0 0.0
    %118 = vmatpush2.msra.mxu0 0.0
    %119 = vmatprep.mubr.f32.mxu0 0.0
    %120 = vmatmul.mubr.f32.gmra.mxu0 %v35
    %v121 = vpop.f32.mrf.mxu0
    %v122 = vadd.f32 %v31, %v121
    %v123 = vpop.f32.mrf.mxu0
    %124 = vmatprep.mubr.f32.mxu0 0.0
    %125 = vmatmul.mubr.f32.gmra.mxu0 %v38
    %v126 = vpop.f32.mrf.mxu0
    %v127 = vadd.f32 %v31, %v126
    %v128 = vpop.f32.mrf.mxu0
    %129 = vmatprep.mubr.f32.mxu0 0.0
    %130 = vmatmul.mubr.f32.gmra.mxu0 %v41
    %v131 = vpop.f32.mrf.mxu0
    %v132 = vadd.f32 %v31, %v131
    %v133 = vpop.f32.mrf.mxu0
    %134 = vmatprep.mubr.f32.mxu0 0.0
    %135 = vmatmul.mubr.f32.gmra.mxu0 %v44
    %v136 = vpop.f32.mrf.mxu0
    %v137 = vadd.f32 %v31, %v136
    %v138 = vpop.f32.mrf.mxu0
    %139 = vmatprep.mubr.f32.mxu0 0.0
    %140 = vmatmul.mubr.f32.gmra.mxu0 %v47
    %v141 = vpop.f32.mrf.mxu0
    %v142 = vadd.f32 %v31, %v141
    %v143 = vpop.f32.mrf.mxu0
    %144 = vmatprep.mubr.f32.mxu0 0.0
    %145 = vmatmul.mubr.f32.gmra.mxu0 %v50
    %v146 = vpop.f32.mrf.mxu0
    %v147 = vadd.f32 %v31, %v146
    %v148 = vpop.f32.mrf.mxu0
    %149 = vmatprep.mubr.f32.mxu0 0.0
    %150 = vmatmul.mubr.f32.gmra.mxu0 %v53
    %v151 = vpop.f32.mrf.mxu0
    %v152 = vadd.f32 %v31, %v151
    %v153 = vpop.f32.mrf.mxu0
    %154 = vdwg.mxu0
    %155 = vst [vmem:[#allocation2] sm:$0xff] %v122
    %156 = vst [vmem:[#allocation2 + $0x8] sm:$0xff] %v127
    %157 = vst [vmem:[#allocation2 + $0x10] sm:$0xff] %v132
    %158 = vst [vmem:[#allocation2 + $0x18] sm:$0xff] %v137
    %159 = vst [vmem:[#allocation2 + $0x20] sm:$0xff] %v142
    %160 = vst [vmem:[#allocation2 + $0x28] sm:$0xff] %v147
    %161 = vst [vmem:[#allocation2 + $0x30] sm:$0x3] %v152
    // Predicated region
    $region14: #{tpu_custom_call.1} parent=1 // pred_check
      _
    $region15: #{tpu_custom_call.1} parent=1 // pred_check_branch
      %163 = sbr.rel (0) target = $region17
    $region16: #{tpu_custom_call.1} parent=1 // pred_region
      %s165 = ssub.s32 896, 896
      %166 = vsyncadd [#allocation3], %s165
      %s167 = sshll.u32 [#allocation2], 4
      %s168 = int_to_ptr.vmem [resolvable:$true] %s167
      %173 = dma.vmem_to_hbm [thread:$0]  %s168, 896, %s3, [#allocation3], 128, 128, 8
    $region17: #{tpu_custom_call.1} parent=1 // pred_fallthru
      _
    // Predicated region
    $region18: #{tpu_custom_call.1} parent=1 // pred_check
      _
    $region19: #{tpu_custom_call.1} parent=1 // pred_check_branch
      %175 = sbr.rel (0) target = $region21
    $region20: #{tpu_custom_call.1} parent=1 // pred_region
      %176 = dma.done [#allocation3], 896
    $region21: #{tpu_custom_call.1} parent=1 // pred_fallthru
      _
    %177 = vsyncpa [#allocation3], 1

</llo_original>
